<compile_context>
chip_gen: v5e
topology: v5e:2x2
jax: 0.10.0
libtpu: 0.0.40
codegen_flags: <defaults>
</compile_context>

<pallas_src>
import functools

import jax
import jax.numpy as jnp
from jax.experimental import pallas as pl
from jax.experimental.pallas import tpu as pltpu


_LANE_CANDIDATES = (2048, 1024, 512, 256, 128)


def _vmem_budget():
    """(in-flight VMEM budget for blocks+temps, scoped-VMEM limit cap)."""
    phys = 64 << 20
    try:
        info = pltpu.get_tpu_info()
        phys = int(getattr(info, "vmem_capacity_bytes", phys)) or phys
    except Exception:
        pass
    if phys <= (64 << 20):
        # v7x-class: 64 MiB physical VMEM per TensorCore.
        return 40 << 20, 48 << 20
    # v5e / v6e: 128 MiB physical VMEM (scoped default is smaller, so we set
    # vmem_limit_bytes explicitly below).
    return 52 << 20, 64 << 20


def _choose_lanes(n):
    """Largest multiple-of-128 lane width dividing n, preferring >=8 rows."""
    best = None
    for lanes in _LANE_CANDIDATES:
        if n % lanes == 0:
            if n // lanes >= 8:
                return lanes
            if best is None:
                best = lanes
    return best


def _pick_row_tile(R, row_elems, itemsize, budget_bytes):
    """Rows per grid step (multiple of 8 when R >= 8) and accumulator rows."""
    if R < 8:
        return R, 1                       # tiny input: full-extent row block
    # 2 inputs x 2 pipeline buffers at input dtype, plus ~3 f32 temporaries.
    per_row = row_elems * (4 * itemsize + 12)
    max_rows = max(8, budget_bytes // per_row)
    rt = min(max_rows, R)
    rt = (rt // 8) * 8
    return rt, 8


def _loss_kernel(pred_ref, ref_ref, abs_out, sq_out, *,
                 multiply_alpha, rows_total, rows_per_tile, acc_rows,
                 mask_rows):
    t = pl.program_id(1)

    @pl.when(t == 0)
    def _init():
        abs_out[...] = jnp.zeros_like(abs_out)
        sq_out[...] = jnp.zeros_like(sq_out)

    p = pred_ref[...].astype(jnp.float32)
    r = ref_ref[...].astype(jnp.float32)
    d = p - r

    if multiply_alpha:
        # Refs are (C=4, rt, L); scale only the RGB diff by the reference
        # alpha (3 muls/pixel, no concatenation).
        alpha = r[3]                                  # (rt, L)
        d_rgb = d[:3] * alpha                         # (3, rt, L)
        d_a = d[3]                                    # (rt, L)
        abs_px = jnp.abs(d_rgb).sum(axis=0) + jnp.abs(d_a)
        sq_px = (d_rgb * d_rgb).sum(axis=0) + d_a * d_a
    else:
        # Refs are lane-dense (rt, L) flat views of the NCHW buffer.
        abs_px = jnp.abs(d)
        sq_px = d * d

    if mask_rows:
        # Last row-tile may extend past the array: zero out-of-range rows
        # (padded block contents are unspecified).
        row0 = t * rows_per_tile
        rid = row0 + jax.lax.broadcasted_iota(jnp.int32, abs_px.shape, 0)
        valid = rid < rows_total
        abs_px = jnp.where(valid, abs_px, 0.0)
        sq_px = jnp.where(valid, sq_px, 0.0)

    lane_w = abs_px.shape[-1]
    if acc_rows == 8:
        # Sublane-tile-aligned fold: pure VPU vreg adds; the cross-lane/
        # sublane reduce is deferred to the (tiny) wrapper-side sum.
        abs_fold = abs_px.reshape(-1, 8, lane_w).sum(axis=0)
        sq_fold = sq_px.reshape(-1, 8, lane_w).sum(axis=0)
    else:
        abs_fold = abs_px.sum(axis=0, keepdims=True)
        sq_fold = sq_px.sum(axis=0, keepdims=True)

    # Output block is resident across the inner "arbitrary" axis -> it is the
    # per-batch accumulator; written back to HBM when `b` advances.
    abs_out[...] += abs_fold
    sq_out[...] += sq_fold


def loss_net_screen(prediction, reference, *,
                    l1: float, l2: float, dssim: float = 0.0,
                    lpips: float = 0.0, multiply_alpha: bool = False):
    """JAX/Pallas equivalent of LossNetScreen.forward.

    Returns (total, l1_value, l2_value) as float32 scalars; `total` matches
    the PyTorch module's return value for dssim = lpips = 0.
    """
    assert l1 > 0 or l2 > 0 or dssim > 0 or lpips > 0, \
        "at least one loss must be active"
    # TODO(synk): dssim (Gaussian-window SSIM) and lpips (pretrained
    # perceptual network) are not implemented; with zero weights (the module
    # defaults) they do not contribute to `total`.
    assert dssim == 0.0 and lpips == 0.0

    assert prediction.ndim == 4
    B, C, H, W = prediction.shape
    assert C == 4
    assert reference.shape == prediction.shape

    budget_bytes, vmem_cap = _vmem_budget()
    itemsize = jnp.dtype(prediction.dtype).itemsize

    if multiply_alpha:
        # Keep channel structure; flatten (H, W) -> (R, L) lane-dense rows
        # (free reshape of the contiguous buffer; channel alignment preserved).
        L = _choose_lanes(H * W) or W
        R = (H * W) // L
        pred_v = prediction.reshape(B, C, R, L)
        ref_v = reference.reshape(B, C, R, L)
        row_elems = C * L
        blk_in = pl.BlockSpec((None, C, None, L), lambda b, t: (b, 0, t, 0))
    else:
        # Pure elementwise loss: view the whole per-batch image as lane-dense
        # rows (C*H*W elements), independent of the NCHW structure.
        L = _choose_lanes(C * H * W) or W
        R = (C * H * W) // L
        pred_v = prediction.reshape(B, R, L)
        ref_v = reference.reshape(B, R, L)
        row_elems = L

    rt, acc_rows = _pick_row_tile(R, row_elems, itemsize, budget_bytes)
    n_row_tiles = -(-R // rt)
    mask_rows = (R % rt) != 0
    n_elems = B * C * H * W

    if multiply_alpha:
        blk_in = pl.BlockSpec((None, C, rt, L), lambda b, t: (b, 0, t, 0))
    else:
        blk_in = pl.BlockSpec((None, rt, L), lambda b, t: (b, t, 0))
    # Per-batch partial-sum slab: block index depends only on b, so the batch
    # axis can be "parallel" (v7x 2-TC sharding) while the row-tile axis
    # carries the accumulator.
    blk_out = pl.BlockSpec((None, acc_rows, L), lambda b, t: (b, 0, 0))

    kernel = functools.partial(
        _loss_kernel,
        multiply_alpha=bool(multiply_alpha),
        rows_total=R,
        rows_per_tile=rt,
        acc_rows=acc_rows,
        mask_rows=mask_rows,
    )

    vmem_limit = int(min(vmem_cap, budget_bytes + (8 << 20)))

    abs_out, sq_out = pl.pallas_call(
        kernel,
        out_shape=[jax.ShapeDtypeStruct((B, acc_rows, L), jnp.float32)] * 2,
        grid_spec=pltpu.PrefetchScalarGridSpec(
            num_scalar_prefetch=0,
            grid=(B, n_row_tiles),
            in_specs=[blk_in, blk_in],
            out_specs=[blk_out, blk_out],
        ),
        compiler_params=pltpu.CompilerParams(
            dimension_semantics=("parallel", "arbitrary"),
            vmem_limit_bytes=vmem_limit),
    )(pred_v, ref_v)

    # Tiny final combine in plain JAX (B * acc_rows * L elements).
    inv_n = jnp.float32(1.0 / n_elems)
    l1_val = jnp.sum(abs_out) * inv_n
    l2_val = jnp.sum(sq_out) * inv_n
    total = jnp.zeros((), jnp.float32)
    if l1 > 0:
        total = total + jnp.float32(l1) * l1_val
    if l2 > 0:
        total = total + jnp.float32(l2) * l2_val
    # Losses are returned as float32 scalars (f32 reduction), not quantized
    # back to the input dtype.
    return total, l1_val, l2_val


def _reference_jnp(prediction, reference, *, l1, l2, multiply_alpha):
    p = prediction.astype(jnp.float32)
    r = reference.astype(jnp.float32)
    if multiply_alpha:
        alpha = r[:, 3:, :, :]
        p = jnp.concatenate([p[:, :3] * alpha, p[:, 3:]], axis=1)
        r = jnp.concatenate([r[:, :3] * alpha, alpha], axis=1)
    d = p - r
    l1_val = jnp.mean(jnp.abs(d))
    l2_val = jnp.mean(d * d)
    total = jnp.zeros((), jnp.float32)
    if l1 > 0:
        total = total + l1 * l1_val
    if l2 > 0:
        total = total + l2 * l2_val
    return total, l1_val, l2_val


if __name__ == "__main__":
    key = jax.random.PRNGKey(0)
    l1_w, l2_w = 1.0, 2.0

    # Small shapes: one nicely divisible, one ragged (exercises the row-mask
    # path and the non-multiple-of-128 lane fallback).
    for shape in ((2, 4, 16, 16), (2, 4, 20, 24)):
        key, kp, kr = jax.random.split(key, 3)
        prediction = jax.random.uniform(kp, shape, dtype=jnp.float32)
        reference = jax.random.uniform(kr, shape, dtype=jnp.float32)

        for multiply_alpha in (True, False):
            total, l1_val, l2_val = loss_net_screen(
                prediction, reference,
                l1=l1_w, l2=l2_w, dssim=0.0, lpips=0.0,
                multiply_alpha=multiply_alpha)
            total = jax.block_until_ready(total)

            ref_total, ref_l1, ref_l2 = _reference_jnp(
                prediction, reference, l1=l1_w, l2=l2_w,
                multiply_alpha=multiply_alpha)
            assert jnp.allclose(total, ref_total, rtol=1e-5, atol=1e-6), \
                (shape, multiply_alpha, total, ref_total)
            assert jnp.allclose(l1_val, ref_l1, rtol=1e-5, atol=1e-6), \
                (shape, multiply_alpha, l1_val, ref_l1)
            assert jnp.allclose(l2_val, ref_l2, rtol=1e-5, atol=1e-6), \
                (shape, multiply_alpha, l2_val, ref_l2)

    print("KERNEL_OK")
</pallas_src>

<mosaic_0001>
module attributes {stable_mosaic.version = 11 : i64} {
  func.func @_loss_kernel(%arg0: i32, %arg1: i32, %arg2: memref<1x4x1x256xf32, #tpu.memory_space<vmem>>, %arg3: memref<1x4x1x256xf32, #tpu.memory_space<vmem>>, %arg4: memref<1x1x256xf32, #tpu.memory_space<vmem>>, %arg5: memref<1x1x256xf32, #tpu.memory_space<vmem>>) attributes {dimension_semantics = [#tpu.dimension_semantics<parallel>, #tpu.dimension_semantics<arbitrary>], iteration_bounds = array<i64: 2, 1>, scalar_prefetch = 0 : i64, scratch_operands = 0 : i64, tpu.core_type = #tpu.core_type<tc>, window_params = [{transform_indices = @transform_0, window_bounds = array<i64: 1, 4, 1, 256>}, {transform_indices = @transform_1, window_bounds = array<i64: 1, 4, 1, 256>}, {transform_indices = @transform_2, window_bounds = array<i64: 1, 1, 256>}, {transform_indices = @transform_3, window_bounds = array<i64: 1, 1, 256>}]} {
    %c0_i32 = arith.constant 0 : i32
    %0 = arith.cmpi eq, %arg1, %c0_i32 : i32
    %1 = arith.extui %0 : i1 to i32
    %c0_i32_0 = arith.constant 0 : i32
    %2 = arith.cmpi ne, %1, %c0_i32_0 : i32
    scf.if %2 {
      %cst_23 = arith.constant 0.000000e+00 : f32
      %40 = vector.broadcast %cst_23 : f32 to vector<1x256xf32>
      %c0_24 = arith.constant 0 : index
      %c0_25 = arith.constant 0 : index
      %c0_26 = arith.constant 0 : index
      %41 = vector.load %arg4[%c0_24, %c0_25, %c0_26] : memref<1x1x256xf32, #tpu.memory_space<vmem>>, vector<1x1x256xf32>
      %42 = vector.shape_cast %41 : vector<1x1x256xf32> to vector<1x256xf32>
      %43 = vector.shape_cast %40 : vector<1x256xf32> to vector<1x1x256xf32>
      tpu.vector_store %arg4[%c0_24, %c0_25, %c0_26], %43 {strides = array<i32>} : memref<1x1x256xf32, #tpu.memory_space<vmem>>, vector<1x1x256xf32>,
      %cst_27 = arith.constant 0.000000e+00 : f32
      %44 = vector.broadcast %cst_27 : f32 to vector<1x256xf32>
      %c0_28 = arith.constant 0 : index
      %c0_29 = arith.constant 0 : index
      %c0_30 = arith.constant 0 : index
      %45 = vector.load %arg5[%c0_28, %c0_29, %c0_30] : memref<1x1x256xf32, #tpu.memory_space<vmem>>, vector<1x1x256xf32>
      %46 = vector.shape_cast %45 : vector<1x1x256xf32> to vector<1x256xf32>
      %47 = vector.shape_cast %44 : vector<1x256xf32> to vector<1x1x256xf32>
      tpu.vector_store %arg5[%c0_28, %c0_29, %c0_30], %47 {strides = array<i32>} : memref<1x1x256xf32, #tpu.memory_space<vmem>>, vector<1x1x256xf32>,
    } else {
    }
    %c0 = arith.constant 0 : index
    %c0_1 = arith.constant 0 : index
    %c0_2 = arith.constant 0 : index
    %c0_3 = arith.constant 0 : index
    %3 = vector.load %arg2[%c0, %c0_1, %c0_2, %c0_3] : memref<1x4x1x256xf32, #tpu.memory_space<vmem>>, vector<1x4x1x256xf32>
    %4 = vector.shape_cast %3 : vector<1x4x1x256xf32> to vector<4x1x256xf32>
    %c0_4 = arith.constant 0 : index
    %c0_5 = arith.constant 0 : index
    %c0_6 = arith.constant 0 : index
    %c0_7 = arith.constant 0 : index
    %5 = vector.load %arg3[%c0_4, %c0_5, %c0_6, %c0_7] : memref<1x4x1x256xf32, #tpu.memory_space<vmem>>, vector<1x4x1x256xf32>
    %6 = vector.shape_cast %5 : vector<1x4x1x256xf32> to vector<4x1x256xf32>
    %7 = arith.subf %4, %6 : vector<4x1x256xf32>
    %8 = vector.extract_strided_slice %6 {offsets = [3, 0, 0], sizes = [1, 1, 256], strides = [1, 1, 1]} : vector<4x1x256xf32> to vector<1x1x256xf32>
    %9 = vector.shape_cast %8 : vector<1x1x256xf32> to vector<1x256xf32>
    %10 = vector.extract_strided_slice %7 {offsets = [0, 0, 0], sizes = [3, 1, 256], strides = [1, 1, 1]} : vector<4x1x256xf32> to vector<3x1x256xf32>
    %11 = vector.shape_cast %9 : vector<1x256xf32> to vector<1x1x256xf32>
    %12 = vector.broadcast %11 : vector<1x1x256xf32> to vector<3x1x256xf32>
    %13 = arith.mulf %10, %12 : vector<3x1x256xf32>
    %14 = vector.extract_strided_slice %7 {offsets = [3, 0, 0], sizes = [1, 1, 256], strides = [1, 1, 1]} : vector<4x1x256xf32> to vector<1x1x256xf32>
    %15 = vector.shape_cast %14 : vector<1x1x256xf32> to vector<1x256xf32>
    %16 = math.absf %13 : vector<3x1x256xf32>
    %cst = arith.constant dense<0.000000e+00> : vector<1x256xf32>
    %17 = vector.multi_reduction <add>, %16, %cst [0] : vector<3x1x256xf32> to vector<1x256xf32>
    %18 = math.absf %15 : vector<1x256xf32>
    %19 = arith.addf %17, %18 : vector<1x256xf32>
    %20 = arith.mulf %13, %13 : vector<3x1x256xf32>
    %cst_8 = arith.constant dense<0.000000e+00> : vector<1x256xf32>
    %21 = vector.multi_reduction <add>, %20, %cst_8 [0] : vector<3x1x256xf32> to vector<1x256xf32>
    %22 = arith.mulf %15, %15 : vector<1x256xf32>
    %23 = arith.addf %21, %22 : vector<1x256xf32>
    %cst_9 = arith.constant dense<0.000000e+00> : vector<256xf32>
    %24 = vector.multi_reduction <add>, %19, %cst_9 [0] : vector<1x256xf32> to vector<256xf32>
    %25 = vector.shape_cast %24 : vector<256xf32> to vector<1x256xf32>
    %cst_10 = arith.constant dense<0.000000e+00> : vector<256xf32>
    %26 = vector.multi_reduction <add>, %23, %cst_10 [0] : vector<1x256xf32> to vector<256xf32>
    %27 = vector.shape_cast %26 : vector<256xf32> to vector<1x256xf32>
    %c0_11 = arith.constant 0 : index
    %c0_12 = arith.constant 0 : index
    %c0_13 = arith.constant 0 : index
    %28 = vector.load %arg4[%c0_11, %c0_12, %c0_13] : memref<1x1x256xf32, #tpu.memory_space<vmem>>, vector<1x1x256xf32>
    %29 = vector.shape_cast %28 : vector<1x1x256xf32> to vector<1x256xf32>
    %30 = arith.addf %29, %25 : vector<1x256xf32>
    %c0_14 = arith.constant 0 : index
    %c0_15 = arith.constant 0 : index
    %c0_16 = arith.constant 0 : index
    %31 = vector.load %arg4[%c0_14, %c0_15, %c0_16] : memref<1x1x256xf32, #tpu.memory_space<vmem>>, vector<1x1x256xf32>
    %32 = vector.shape_cast %31 : vector<1x1x256xf32> to vector<1x256xf32>
    %33 = vector.shape_cast %30 : vector<1x256xf32> to vector<1x1x256xf32>
    tpu.vector_store %arg4[%c0_14, %c0_15, %c0_16], %33 {strides = array<i32>} : memref<1x1x256xf32, #tpu.memory_space<vmem>>, vector<1x1x256xf32>,
    %c0_17 = arith.constant 0 : index
    %c0_18 = arith.constant 0 : index
    %c0_19 = arith.constant 0 : index
    %34 = vector.load %arg5[%c0_17, %c0_18, %c0_19] : memref<1x1x256xf32, #tpu.memory_space<vmem>>, vector<1x1x256xf32>
    %35 = vector.shape_cast %34 : vector<1x1x256xf32> to vector<1x256xf32>
    %36 = arith.addf %35, %27 : vector<1x256xf32>
    %c0_20 = arith.constant 0 : index
    %c0_21 = arith.constant 0 : index
    %c0_22 = arith.constant 0 : index
    %37 = vector.load %arg5[%c0_20, %c0_21, %c0_22] : memref<1x1x256xf32, #tpu.memory_space<vmem>>, vector<1x1x256xf32>
    %38 = vector.shape_cast %37 : vector<1x1x256xf32> to vector<1x256xf32>
    %39 = vector.shape_cast %36 : vector<1x256xf32> to vector<1x1x256xf32>
    tpu.vector_store %arg5[%c0_20, %c0_21, %c0_22], %39 {strides = array<i32>} : memref<1x1x256xf32, #tpu.memory_space<vmem>>, vector<1x1x256xf32>,
    return
  }
  func.func @transform_0(%arg0: i32, %arg1: i32) -> (i32, i32, i32, i32) {
    %c0_i32 = arith.constant 0 : i32
    %c0_i32_0 = arith.constant 0 : i32
    %c0_i32_1 = arith.constant 0 : i32
    return %arg0, %c0_i32, %arg1, %c0_i32_0 : i32, i32, i32, i32
  }
  func.func @transform_1(%arg0: i32, %arg1: i32) -> (i32, i32, i32, i32) {
    %c0_i32 = arith.constant 0 : i32
    %c0_i32_0 = arith.constant 0 : i32
    %c0_i32_1 = arith.constant 0 : i32
    return %arg0, %c0_i32, %arg1, %c0_i32_0 : i32, i32, i32, i32
  }
  func.func @transform_2(%arg0: i32, %arg1: i32) -> (i32, i32, i32) {
    %c0_i32 = arith.constant 0 : i32
    %c0_i32_0 = arith.constant 0 : i32
    %c0_i32_1 = arith.constant 0 : i32
    return %arg0, %c0_i32, %c0_i32_0 : i32, i32, i32
  }
  func.func @transform_3(%arg0: i32, %arg1: i32) -> (i32, i32, i32) {
    %c0_i32 = arith.constant 0 : i32
    %c0_i32_0 = arith.constant 0 : i32
    %c0_i32_1 = arith.constant 0 : i32
    return %arg0, %c0_i32, %c0_i32_0 : i32, i32, i32
  }
}

</mosaic_0001>

<llo_original>
// kernel: tpu_custom_call.1
$region0: #{tpu_custom_call.1}
  #allocation0 [shape = 'u32[]', space=smem, size = 0x4, offset = 0x4, fixed_abs, tag = 'smem constant byte address 0x4 - core index']
  #allocation1 [shape = 'u32[72,128]{1,0:T(1,128)}', space=vmem, size = 0x9000, scoped, tag = 'internal scratch']
  %s0 = inlined_call_operand.hbm [shape: f32[2,4,1,256], index: 0, kind: input, shape index: {}]
  %s1 = inlined_call_operand.hbm [shape: f32[2,4,1,256], index: 1, kind: input, shape index: {}]
  %s2 = inlined_call_operand.hbm [shape: f32[2,1,256], index: 2, kind: output, shape index: {0}]
  %s3 = inlined_call_operand.hbm [shape: f32[2,1,256], index: 3, kind: output, shape index: {1}]
  %4 = xla_tuple %s2, %s3
  %s5 = sld [smem:[#allocation0]]
  $region61: #{tpu_custom_call.1} parent=0
    _
  %s7 = ssub.s32 1, %s5
  %s8 = scalar_select 0, %s7, %s5
  $region1: #{tpu_custom_call.1} parent=0
    #allocation2 [shape = 'u8[8192]{0}', space=vmem, size = 0x2000, scoped, tag = 'input window, operand 0']
    #allocation3 [shape = 's32[2]{0}', space=sflag, size = 0x8, scoped, tag = 'scoped memory for tpu_custom_call.1']
    #allocation4 [shape = 's32[2]{0}', space=sflag, size = 0x8, scoped, tag = 'scoped memory for tpu_custom_call.1']
    #allocation5 [shape = 'u8[8192]{0}', space=vmem, size = 0x2000, scoped, tag = 'input window, operand 1']
    #allocation6 [shape = 's32[2]{0}', space=sflag, size = 0x8, scoped, tag = 'scoped memory for tpu_custom_call.1']
    #allocation7 [shape = 'u8[2048]{0}', space=vmem, size = 0x800, scoped, tag = 'output window, operand 0']
    #allocation8 [shape = 'u8[2048]{0}', space=vmem, size = 0x800, scoped, tag = 'output window, operand 1']
    #allocation9 [shape = 's32[2]{0}', space=sflag, size = 0x8, scoped, tag = 'scoped memory for tpu_custom_call.1']
    %9 = vsyncpa [#allocation3], 0
    %s10 = scalar_lea.sflag [#allocation3], 1
    %11 = vsyncpa %s10, 0
    %12 = vsyncpa [#allocation6], 0
    %s13 = scalar_lea.sflag [#allocation6], 1
    %14 = vsyncpa %s13, 0
    %15 = vsyncpa [#allocation4], 0
    %s16 = scalar_lea.sflag [#allocation4], 1
    %17 = vsyncpa %s16, 0
    %18 = vsyncpa [#allocation9], 0
    %s19 = scalar_lea.sflag [#allocation9], 1
    %20 = vsyncpa %s19, 0
    loop: start=0, step=1, limit=4
    $region2: #{tpu_custom_call.1} parent=1 // loop_pre_header
      _
    $region3: #{tpu_custom_call.1} parent=1 // loop_header
      %s22 = sphi 0, %s26
      %p23 = scmp.ge.s32.totalorder %s22, 4
      %s29 = sphi 0, %s41
      %s30 = sphi 0, %s37
      %s31 = sphi 0, %s29
      %s32 = sphi 0, %s30
      %s33 = sphi 0, %s31
      %s34 = sphi 0, %s32
      %s46 = sphi 0, %s48
      %s49 = sphi 0, %s46
      %s50 = sphi 0, %s49
      %s66 = sphi 0, %s50
      %s74 = sphi 0, %s76
      %s77 = sphi 0, %s74
      %s78 = sphi 0, %s77
      %s94 = sphi 0, %s78
      %s100 = sphi 0, %s102
      %s103 = sphi 0, %s100
      %s104 = sphi 0, %s103
      %s120 = sphi 0, %s104
      %s126 = sphi 0, %s128
      %s129 = sphi 0, %s126
      %s130 = sphi 0, %s129
      %s146 = sphi 0, %s130
    $region4: #{tpu_custom_call.1} parent=1 // loop_header_branch
      %25 = sbr.rel (%p23) target = $region8
    $region5: #{tpu_custom_call.1} parent=1 // loop_body
      %s27 = ssub.s32 %s22, 1
      %s28 = ssub.s32 %s22, 2
      %s35 = sadd.s32 1, %s30
      %p36 = scmp.ge.s32.totalorder %s35, 1
      %s37 = scalar_select %p36, 0, %s35
      %s38 = sadd.s32 1, %s29
      %s39 = scalar_select %p36, %s38, %s29
      %p40 = scmp.ge.s32.totalorder %s39, 2
      %s41 = scalar_select %p40, 0, %s39
      %s42 = ssub.s32 %s29, %s41
      %s43 = ssub.s32 %s30, %s37
      %s44 = sor.u32 %s42, %s43
      %p45 = scmp.eq.s32.totalorder %s44, 0
      %s47 = sadd.s32 %s46, 1
      %s48 = scalar_select %p45, %s46, %s47
      %p51 = pneg %p45
      %p52 = scmp.eq.s32.totalorder %s22, 1
      %p53 = por %p51, %p52
      %p54 = scmp.ne.s32.totalorder %s46, %s49
      %p55 = scmp.eq.s32.totalorder %s22, 0
      %p56 = por %p54, %p55
      %p57 = scmp.ne.s32.totalorder %s46, %s49
      %p58 = scmp.eq.s32.totalorder %s27, 1
      %p59 = por %p57, %p58
      %p60 = scmp.ne.s32.totalorder %s49, %s50
      %p61 = scmp.eq.s32.totalorder %s27, 0
      %p62 = por %p60, %p61
      %p63 = scmp.ne.s32.totalorder %s49, %s50
      %p64 = scmp.eq.s32.totalorder %s28, 1
      %p65 = por %p63, %p64
      %p67 = scmp.ne.s32.totalorder %s50, %s66
      %p68 = scmp.eq.s32.totalorder %s28, 0
      %p69 = por %p67, %p68
      %s70 = ssub.s32 %s29, %s41
      %s71 = ssub.s32 %s30, %s37
      %s72 = sor.u32 %s70, %s71
      %p73 = scmp.eq.s32.totalorder %s72, 0
      %s75 = sadd.s32 %s74, 1
      %s76 = scalar_select %p73, %s74, %s75
      %p79 = pneg %p73
      %p80 = scmp.eq.s32.totalorder %s22, 1
      %p81 = por %p79, %p80
      %p82 = scmp.ne.s32.totalorder %s74, %s77
      %p83 = scmp.eq.s32.totalorder %s22, 0
      %p84 = por %p82, %p83
      %p85 = scmp.ne.s32.totalorder %s74, %s77
      %p86 = scmp.eq.s32.totalorder %s27, 1
      %p87 = por %p85, %p86
      %p88 = scmp.ne.s32.totalorder %s77, %s78
      %p89 = scmp.eq.s32.totalorder %s27, 0
      %p90 = por %p88, %p89
      %p91 = scmp.ne.s32.totalorder %s77, %s78
      %p92 = scmp.eq.s32.totalorder %s28, 1
      %p93 = por %p91, %p92
      %p95 = scmp.ne.s32.totalorder %s78, %s94
      %p96 = scmp.eq.s32.totalorder %s28, 0
      %p97 = por %p95, %p96
      %s98 = ssub.s32 %s29, %s41
      %p99 = scmp.eq.s32.totalorder %s98, 0
      %s101 = sadd.s32 %s100, 1
      %s102 = scalar_select %p99, %s100, %s101
      %p105 = pneg %p99
      %p106 = scmp.eq.s32.totalorder %s22, 1
      %p107 = por %p105, %p106
      %p108 = scmp.ne.s32.totalorder %s100, %s103
      %p109 = scmp.eq.s32.totalorder %s22, 0
      %p110 = por %p108, %p109
      %p111 = scmp.ne.s32.totalorder %s100, %s103
      %p112 = scmp.eq.s32.totalorder %s27, 1
      %p113 = por %p111, %p112
      %p114 = scmp.ne.s32.totalorder %s103, %s104
      %p115 = scmp.eq.s32.totalorder %s27, 0
      %p116 = por %p114, %p115
      %p117 = scmp.ne.s32.totalorder %s103, %s104
      %p118 = scmp.eq.s32.totalorder %s28, 1
      %p119 = por %p117, %p118
      %p121 = scmp.ne.s32.totalorder %s104, %s120
      %p122 = scmp.eq.s32.totalorder %s28, 0
      %p123 = por %p121, %p122
      %s124 = ssub.s32 %s29, %s41
      %p125 = scmp.eq.s32.totalorder %s124, 0
      %s127 = sadd.s32 %s126, 1
      %s128 = scalar_select %p125, %s126, %s127
      %p131 = pneg %p125
      %p132 = scmp.eq.s32.totalorder %s22, 1
      %p133 = por %p131, %p132
      %p134 = scmp.ne.s32.totalorder %s126, %s129
      %p135 = scmp.eq.s32.totalorder %s22, 0
      %p136 = por %p134, %p135
      %p137 = scmp.ne.s32.totalorder %s126, %s129
      %p138 = scmp.eq.s32.totalorder %s27, 1
      %p139 = por %p137, %p138
      %p140 = scmp.ne.s32.totalorder %s129, %s130
      %p141 = scmp.eq.s32.totalorder %s27, 0
      %p142 = por %p140, %p141
      %p143 = scmp.ne.s32.totalorder %s129, %s130
      %p144 = scmp.eq.s32.totalorder %s28, 1
      %p145 = por %p143, %p144
      %p147 = scmp.ne.s32.totalorder %s130, %s146
      %p148 = scmp.eq.s32.totalorder %s28, 0
      %p149 = por %p147, %p148
      %p150 = scmp.le.s32.totalorder 1, %s22
      %p151 = scmp.lt.s32.totalorder %s22, 3
      %p152 = pnand %p150, %p151
      %p153 = pneg %p152
      // Predicated region
      $region9: #{tpu_custom_call.1} parent=5 // pred_check
        _
      $region10: #{tpu_custom_call.1} parent=5 // pred_check_branch
        %155 = sbr.rel (%p152) target = $region12
      $region11: #{tpu_custom_call.1} parent=5 // pred_region
        %s156 = ssub.s32 %s22, 1
      $region12: #{tpu_custom_call.1} parent=5 // pred_fallthru
        _
      %p157 = scmp.lt.s32.totalorder %s22, 2
      // Predicated region
      $region13: #{tpu_custom_call.1} parent=5 // pred_check
        %p158 = pneg %p157
      $region14: #{tpu_custom_call.1} parent=5 // pred_check_branch
        %160 = sbr.rel (%p158) target = $region16
      $region15: #{tpu_custom_call.1} parent=5 // pred_region
        // Predicated region
        $region17: #{tpu_custom_call.1} parent=15 // pred_check
          %p161 = pneg %p56
        $region18: #{tpu_custom_call.1} parent=15 // pred_check_branch
          %163 = sbr.rel (%p161) target = $region20
        $region19: #{tpu_custom_call.1} parent=15 // pred_region
          %s164 = sand.u32 %s46, 1
          %s165 = scalar_lea.sflag [#allocation3], %s164
          %s166 = sand.u32 %s46, 1
          %s167 = smul.addr %s166, 8
          %s168 = scalar_lea.vmem [#allocation2], %s167
          %170 = vsyncadd %s165, 0
          %s171 = smul.addr %s30, 2
          %s172 = smul.addr %s29, 8
          %s173 = sadd.s32 %s171, %s172
          %s174 = scalar_lea.hbm %s0, %s173
          %s175 = sshll.u32 %s174, 4
          %s176 = int_to_ptr.hbm [resolvable:$true] %s175
          %s177 = sshll.u32 %s168, 4
          %s178 = int_to_ptr.vmem [resolvable:$true] %s177
          %183 = dma.hbm_to_vmem [thread:$0]  %s176, 128, %s178, %s165, 32, 32, 2
        $region20: #{tpu_custom_call.1} parent=15 // pred_fallthru
          _
        // Predicated region
        $region21: #{tpu_custom_call.1} parent=15 // pred_check
          %p184 = pneg %p84
        $region22: #{tpu_custom_call.1} parent=15 // pred_check_branch
          %186 = sbr.rel (%p184) target = $region24
        $region23: #{tpu_custom_call.1} parent=15 // pred_region
          %s187 = sand.u32 %s74, 1
          %s188 = scalar_lea.sflag [#allocation6], %s187
          %s189 = sand.u32 %s74, 1
          %s190 = smul.addr %s189, 8
          %s191 = scalar_lea.vmem [#allocation5], %s190
          %193 = vsyncadd %s188, 0
          %s194 = smul.addr %s30, 2
          %s195 = smul.addr %s29, 8
          %s196 = sadd.s32 %s194, %s195
          %s197 = scalar_lea.hbm %s1, %s196
          %s198 = sshll.u32 %s197, 4
          %s199 = int_to_ptr.hbm [resolvable:$true] %s198
          %s200 = sshll.u32 %s191, 4
          %s201 = int_to_ptr.vmem [resolvable:$true] %s200
          %206 = dma.hbm_to_vmem [thread:$0]  %s199, 128, %s201, %s188, 32, 32, 2
        $region24: #{tpu_custom_call.1} parent=15 // pred_fallthru
          _
      $region16: #{tpu_custom_call.1} parent=5 // pred_fallthru
        _
      %p207 = scmp.le.s32.totalorder 1, %s22
      %p208 = scmp.lt.s32.totalorder %s22, 3
      %p209 = pnand %p207, %p208
      %p210 = pneg %p209
      // Predicated region
      $region25: #{tpu_custom_call.1} parent=5 // pred_check
        _
      $region26: #{tpu_custom_call.1} parent=5 // pred_check_branch
        %212 = sbr.rel (%p209) target = $region28
      $region27: #{tpu_custom_call.1} parent=5 // pred_region
        %s213 = ssub.s32 %s22, 1
        %s214 = sand.u32 %s49, 1
        %s215 = scalar_lea.sflag [#allocation3], %s214
        %s216 = sand.u32 %s49, 1
        %s217 = smul.addr %s216, 8
        %s218 = scalar_lea.vmem [#allocation2], %s217
        // Predicated region
        $region29: #{tpu_custom_call.1} parent=27 // pred_check
          %p219 = pneg %p62
        $region30: #{tpu_custom_call.1} parent=27 // pred_check_branch
          %221 = sbr.rel (%p219) target = $region32
        $region31: #{tpu_custom_call.1} parent=27 // pred_region
          %223 = dma.done %s215, 128
        $region32: #{tpu_custom_call.1} parent=27 // pred_fallthru
          _
        %s224 = sand.u32 %s77, 1
        %s225 = scalar_lea.sflag [#allocation6], %s224
        %s226 = sand.u32 %s77, 1
        %s227 = smul.addr %s226, 8
        %s228 = scalar_lea.vmem [#allocation5], %s227
        // Predicated region
        $region33: #{tpu_custom_call.1} parent=27 // pred_check
          %p229 = pneg %p90
        $region34: #{tpu_custom_call.1} parent=27 // pred_check_branch
          %231 = sbr.rel (%p229) target = $region36
        $region35: #{tpu_custom_call.1} parent=27 // pred_region
          %233 = dma.done %s225, 128
        $region36: #{tpu_custom_call.1} parent=27 // pred_fallthru
          _
        %s234 = sand.u32 %s49, 1
        %s235 = scalar_lea.sflag [#allocation3], %s234
        %s236 = sand.u32 %s49, 1
        %s237 = smul.addr %s236, 8
        %s238 = scalar_lea.vmem [#allocation2], %s237
        %p239 = pneg %p62
        %p240 = pneg %p59
        %s241 = sand.u32 %s77, 1
        %s242 = scalar_lea.sflag [#allocation6], %s241
        %s243 = sand.u32 %s77, 1
        %s244 = smul.addr %s243, 8
        %s245 = scalar_lea.vmem [#allocation5], %s244
        %p246 = pneg %p90
        %p247 = pneg %p87
        %p248 = pneg %p116
        %p249 = pneg %p113
        %s250 = sand.u32 %s103, 1
        %s251 = scalar_lea.sflag [#allocation4], %s250
        %s252 = sand.u32 %s103, 1
        %s253 = smul.addr %s252, 2
        %s254 = scalar_lea.vmem [#allocation7], %s253
        %p255 = pneg %p142
        %p256 = pneg %p139
        %s257 = sand.u32 %s129, 1
        %s258 = scalar_lea.sflag [#allocation9], %s257
        %s259 = sand.u32 %s129, 1
        %s260 = smul.addr %s259, 2
        %s261 = scalar_lea.vmem [#allocation8], %s260
        %p262 = scmp.eq.s32.totalorder %s32, 0
        // Predicated region
        $region37: #{tpu_custom_call.1} parent=27 // pred_check
          %p263 = pneg %p262
        $region38: #{tpu_custom_call.1} parent=27 // pred_check_branch
          %265 = sbr.rel (%p263) target = $region40
        $region39: #{tpu_custom_call.1} parent=27 // pred_region
          %v266 = vlaneseq
          %vm267 = vcmp.ge.s32.totalorder %v266, 0
          %vm268 = vcmp.lt.s32.totalorder %v266, 256
          %vm269 = vmand %vm267, %vm268
          %270 = vst.msk [vmem:[%s254] sm:$0x3] %vm269, 0.0
          %271 = vst.msk [vmem:[%s261] sm:$0x3] %vm269, 0.0
        $region40: #{tpu_custom_call.1} parent=27 // pred_fallthru
          _
        %v272 = vld [vmem:[%s218] sm:$0x3]
        %v273 = vld [vmem:[%s218 + $0x2] sm:$0x3]
        %v274 = vld [vmem:[%s218 + $0x4] sm:$0x3]
        %v275 = vld [vmem:[%s218 + $0x6] sm:$0x3]
        %v276 = vld [vmem:[%s228] sm:$0x3]
        %v277 = vld [vmem:[%s228 + $0x2] sm:$0x3]
        %v278 = vld [vmem:[%s228 + $0x4] sm:$0x3]
        %v279 = vld [vmem:[%s228 + $0x6] sm:$0x3]
        %v280 = vsub.f32 %v272, %v276
        %v281 = vsub.f32 %v273, %v277
        %v282 = vsub.f32 %v274, %v278
        %v283 = vsub.f32 %v275, %v279
        %v284 = vmul.f32 %v280, %v279
        %v285 = vmul.f32 %v281, %v279
        %v286 = vmul.f32 %v282, %v279
        %v287 = vand.u32 2147483647, %v284
        %v288 = vand.u32 2147483647, %v285
        %v289 = vand.u32 2147483647, %v286
        %v293 = vperm.slane %v287, 0
        %v294 = vperm.slane %v287, 1
        %v295 = vperm.slane %v288, 0
        %v296 = vperm.slane %v288, 1
        %v297 = vperm.slane %v289, 0
        %v298 = vperm.slane %v289, 1
        %vm305 = vcmask 1040384
        %v306 = vsel %vm305, %v293, 0.0
        %v307 = vsel %vm305, %v295, 0.0
        %v308 = vadd.f32 %v306, %v307
        %v309 = vsel %vm305, %v297, 0.0
        %v310 = vadd.f32 %v308, %v309
        %v311 = vsel %vm305, %v294, 0.0
        %v312 = vsel %vm305, %v296, 0.0
        %v313 = vadd.f32 %v311, %v312
        %v314 = vsel %vm305, %v298, 0.0
        %v315 = vadd.f32 %v313, %v314
        %v316 = vand.u32 2147483647, %v283
        %v318 = vperm.slane %v316, 0
        %v319 = vperm.slane %v316, 1
        %v322 = vadd.f32 %v310, %v318
        %v323 = vadd.f32 %v315, %v319
        %v324 = vmul.f32 %v284, %v284
        %v325 = vmul.f32 %v285, %v285
        %v326 = vmul.f32 %v286, %v286
        %v330 = vperm.slane %v324, 0
        %v331 = vperm.slane %v324, 1
        %v332 = vperm.slane %v325, 0
        %v333 = vperm.slane %v325, 1
        %v334 = vperm.slane %v326, 0
        %v335 = vperm.slane %v326, 1
        %v342 = vsel %vm305, %v330, 0.0
        %v343 = vsel %vm305, %v332, 0.0
        %v344 = vadd.f32 %v342, %v343
        %v345 = vsel %vm305, %v334, 0.0
        %v346 = vadd.f32 %v344, %v345
        %v347 = vsel %vm305, %v331, 0.0
        %v348 = vsel %vm305, %v333, 0.0
        %v349 = vadd.f32 %v347, %v348
        %v350 = vsel %vm305, %v335, 0.0
        %v351 = vadd.f32 %v349, %v350
        %v352 = vmul.f32 %v283, %v283
        %v354 = vperm.slane %v352, 0
        %v355 = vperm.slane %v352, 1
        %v358 = vadd.f32 %v346, %v354
        %v359 = vadd.f32 %v351, %v355
        %v360 = vadd.f32 %v322, 0.0
        %v361 = vadd.f32 %v323, 0.0
        %v362 = vadd.f32 %v358, 0.0
        %v363 = vadd.f32 %v359, 0.0
        %v364 = vld [vmem:[%s254] sm:$0x3]
        %v367 = vrot.slane %v361, 7
        %v368 = vsel %vm305, %v360, %v367
        %v370 = vadd.f32 %v364, %v368
        %v371 = vlaneseq
        %vm372 = vcmp.ge.s32.totalorder %v371, 0
        %vm373 = vcmp.lt.s32.totalorder %v371, 256
        %vm374 = vmand %vm372, %vm373
        %375 = vst.msk [vmem:[%s254] sm:$0x3] %vm374, %v370
        %v376 = vld [vmem:[%s261] sm:$0x3]
        %v379 = vrot.slane %v363, 7
        %v380 = vsel %vm305, %v362, %v379
        %v382 = vadd.f32 %v376, %v380
        %383 = vst.msk [vmem:[%s261] sm:$0x3] %vm374, %v382
        %s384 = sand.u32 %s103, 1
        %s385 = scalar_lea.sflag [#allocation4], %s384
        %s386 = sand.u32 %s103, 1
        %s387 = smul.addr %s386, 2
        %s388 = scalar_lea.vmem [#allocation7], %s387
        %s389 = sand.u32 %s129, 1
        %s390 = scalar_lea.sflag [#allocation9], %s389
        %s391 = sand.u32 %s129, 1
        %s392 = smul.addr %s391, 2
        %s393 = scalar_lea.vmem [#allocation8], %s392
        // Predicated region
        $region41: #{tpu_custom_call.1} parent=27 // pred_check
          %p394 = pneg %p113
        $region42: #{tpu_custom_call.1} parent=27 // pred_check_branch
          %396 = sbr.rel (%p394) target = $region44
        $region43: #{tpu_custom_call.1} parent=27 // pred_region
          %398 = vsyncadd %s385, 0
          %s399 = smul.addr %s31, 2
          %s400 = scalar_lea.hbm %s2, %s399
          %s402 = sshll.u32 %s388, 4
          %s403 = int_to_ptr.vmem [resolvable:$true] %s402
          %s404 = sshll.u32 %s400, 4
          %s405 = int_to_ptr.hbm [resolvable:$true] %s404
          %407 = dma.vmem_to_hbm [thread:$0]  %s403, 32, %s405, %s385
        $region44: #{tpu_custom_call.1} parent=27 // pred_fallthru
          _
        // Predicated region
        $region45: #{tpu_custom_call.1} parent=27 // pred_check
          %p408 = pneg %p139
        $region46: #{tpu_custom_call.1} parent=27 // pred_check_branch
          %410 = sbr.rel (%p408) target = $region48
        $region47: #{tpu_custom_call.1} parent=27 // pred_region
          %412 = vsyncadd %s390, 0
          %s413 = smul.addr %s31, 2
          %s414 = scalar_lea.hbm %s3, %s413
          %s416 = sshll.u32 %s393, 4
          %s417 = int_to_ptr.vmem [resolvable:$true] %s416
          %s418 = sshll.u32 %s414, 4
          %s419 = int_to_ptr.hbm [resolvable:$true] %s418
          %421 = dma.vmem_to_hbm [thread:$0]  %s417, 32, %s419, %s390
        $region48: #{tpu_custom_call.1} parent=27 // pred_fallthru
          _
      $region28: #{tpu_custom_call.1} parent=5 // pred_fallthru
        _
      %p422 = scmp.le.s32.totalorder 2, %s22
      // Predicated region
      $region49: #{tpu_custom_call.1} parent=5 // pred_check
        %p423 = pneg %p422
      $region50: #{tpu_custom_call.1} parent=5 // pred_check_branch
        %425 = sbr.rel (%p423) target = $region52
      $region51: #{tpu_custom_call.1} parent=5 // pred_region
        %s426 = ssub.s32 %s22, 2
        // Predicated region
        $region53: #{tpu_custom_call.1} parent=51 // pred_check
          %p427 = pneg %p119
        $region54: #{tpu_custom_call.1} parent=51 // pred_check_branch
          %429 = sbr.rel (%p427) target = $region56
        $region55: #{tpu_custom_call.1} parent=51 // pred_region
          %s430 = sand.u32 %s104, 1
          %s431 = scalar_lea.sflag [#allocation4], %s430
          %s432 = sand.u32 %s104, 1
          %s433 = smul.addr %s432, 2
          %s434 = scalar_lea.vmem [#allocation7], %s433
          %436 = dma.done %s431, 32
        $region56: #{tpu_custom_call.1} parent=51 // pred_fallthru
          _
        // Predicated region
        $region57: #{tpu_custom_call.1} parent=51 // pred_check
          %p437 = pneg %p145
        $region58: #{tpu_custom_call.1} parent=51 // pred_check_branch
          %439 = sbr.rel (%p437) target = $region60
        $region59: #{tpu_custom_call.1} parent=51 // pred_region
          %s440 = sand.u32 %s130, 1
          %s441 = scalar_lea.sflag [#allocation9], %s440
          %s442 = sand.u32 %s130, 1
          %s443 = smul.addr %s442, 2
          %s444 = scalar_lea.vmem [#allocation8], %s443
          %446 = dma.done %s441, 32
        $region60: #{tpu_custom_call.1} parent=51 // pred_fallthru
          _
      $region52: #{tpu_custom_call.1} parent=5 // pred_fallthru
        _
    $region6: #{tpu_custom_call.1} parent=1 // loop_footer
      %s26 = sadd.s32 1, %s22
    $region7: #{tpu_custom_call.1} parent=1 // loop_footer_branch
      %21 = sbr.rel target = $region3
    $region8: #{tpu_custom_call.1} parent=1 // loop_exit
      _
    %447 = vsyncpa [#allocation3], 1
    %s448 = scalar_lea.sflag [#allocation3], 1
    %449 = vsyncpa %s448, 1
    %450 = vsyncpa [#allocation6], 1
    %s451 = scalar_lea.sflag [#allocation6], 1
    %452 = vsyncpa %s451, 1
    %453 = vsyncpa [#allocation4], 1
    %s454 = scalar_lea.sflag [#allocation4], 1
    %455 = vsyncpa %s454, 1
    %456 = vsyncpa [#allocation9], 1
    %s457 = scalar_lea.sflag [#allocation9], 1
    %458 = vsyncpa %s457, 1

</llo_original>
